<compile_context>
chip_gen: v5e
topology: v5e:2x2
jax: 0.10.0
libtpu: 0.0.40
codegen_flags: <defaults>
</compile_context>

<pallas_src>
import jax
import jax.numpy as jnp
from jax.experimental import pallas as pl
from jax.experimental.pallas import tpu as pltpu


def _round_up(x, m):
    return ((x + m - 1) // m) * m


def _corr2d_kernel(x_hbm, w_ref, b_ref, o_ref, xbuf, sem):
    """Computes one (tile_h, tile_w) output tile of corr2d(x, w) + b.

    x_hbm : ANY/HBM [H_pad, W_pad]   raw ref; halo tile DMA'd manually
    w_ref : SMEM    [kh, kw]         scalar taps
    b_ref : SMEM    [1]              scalar bias
    o_ref : VMEM    [tile_h, tile_w] auto-pipelined output tile
    xbuf  : VMEM    [hs_pad, ws_pad] halo input scratch (aligned)
    sem   : DMA semaphore
    """
    kh, kw = w_ref.shape
    tile_h, tile_w = o_ref.shape
    hs_pad, ws_pad = xbuf.shape

    i = pl.program_id(0)
    j = pl.program_id(1)
    r0 = pl.multiple_of(i * tile_h, 8)
    c0 = pl.multiple_of(j * tile_w, 128)

    # Aligned halo tile: HBM -> VMEM scratch.
    cp = pltpu.make_async_copy(
        x_hbm.at[pl.ds(r0, hs_pad), pl.ds(c0, ws_pad)],
        xbuf,
        sem,
    )
    cp.start()
    cp.wait()

    # Bias folded into the accumulator init (no separate full-tile add at the end).
    acc = jnp.full((tile_h, tile_w), b_ref[0], dtype=jnp.float32)

    # Unrolled static loop over the (small) kernel taps.  One row-band load per di;
    # per-tap lane shifts are static slices of that loaded value.
    for di in range(kh):
        xr = xbuf[pl.ds(di, tile_h), :]              # (tile_h, ws_pad)
        for dj in range(kw):
            window = xr[:, dj:dj + tile_w]           # (tile_h, tile_w)
            acc = acc + w_ref[di, dj] * window

    o_ref[...] = acc


def conv2d_forward(x, weight, bias, *, max_tile_h=256, max_tile_w=1024):
    """Equivalent of Conv2D.forward: corr2d(x, weight) + bias."""
    x = x.astype(jnp.float32)
    weight = weight.astype(jnp.float32)
    bias = bias.astype(jnp.float32)

    H, W = x.shape
    kh, kw = weight.shape
    h_out = H - kh + 1
    w_out = W - kw + 1

    # Lane-/sublane-aligned output tiles.
    tile_h = min(max_tile_h, _round_up(h_out, 8))
    tile_w = min(max_tile_w, _round_up(w_out, 128))
    n_th = pl.cdiv(h_out, tile_h)
    n_tw = pl.cdiv(w_out, tile_w)

    # Aligned halo extents so every DMA copies a full (hs_pad, ws_pad) rectangle.
    halo_h = _round_up(kh - 1, 8)
    halo_w = _round_up(kw - 1, 128)
    hs_pad = tile_h + halo_h
    ws_pad = tile_w + halo_w

    # Zero-pad the image so each grid step can fetch its full aligned halo tile.
    h_pad = n_th * tile_h + halo_h
    w_pad = n_tw * tile_w + halo_w
    x_pad = jnp.pad(x, ((0, h_pad - H), (0, w_pad - W)))

    grid_spec = pltpu.PrefetchScalarGridSpec(
        num_scalar_prefetch=0,
        grid=(n_th, n_tw),
        in_specs=[
            pl.BlockSpec(memory_space=pl.ANY),                   # x_pad: stays in HBM
            pl.BlockSpec(memory_space=pltpu.MemorySpace.SMEM),   # weight: scalars
            pl.BlockSpec(memory_space=pltpu.MemorySpace.SMEM),   # bias: scalar
        ],
        out_specs=pl.BlockSpec((tile_h, tile_w), lambda i, j: (i, j)),
        scratch_shapes=[
            pltpu.VMEM((hs_pad, ws_pad), jnp.float32),           # halo input tile
            pltpu.SemaphoreType.DMA,
        ],
    )

    out_pad = pl.pallas_call(
        _corr2d_kernel,
        out_shape=jax.ShapeDtypeStruct((n_th * tile_h, n_tw * tile_w), jnp.float32),
        grid_spec=grid_spec,
        compiler_params=pltpu.CompilerParams(
            dimension_semantics=("parallel", "parallel"),
            vmem_limit_bytes=32 * 1024 * 1024,
        ),
        cost_estimate=pl.CostEstimate(
            flops=2 * kh * kw * h_out * w_out,
            transcendentals=0,
            bytes_accessed=4 * (H * W + h_out * w_out + kh * kw + 1),
        ),
    )(x_pad, weight, bias)

    return out_pad[:h_out, :w_out]


def _reference_corr2d(x, k, b):
    """Pure-JAX reference mirroring the PyTorch corr2d loop."""
    kh, kw = k.shape
    h_out = x.shape[0] - kh + 1
    w_out = x.shape[1] - kw + 1
    out = jnp.zeros((h_out, w_out), jnp.float32)
    for i in range(kh):
        for j in range(kw):
            out = out + k[i, j] * jax.lax.dynamic_slice(x, (i, j), (h_out, w_out))
    return out + b[0]


if __name__ == "__main__":
    key = jax.random.PRNGKey(0)
    k_x, k_w, k_b, k_x2 = jax.random.split(key, 4)

    # Shapes consistent with the module: a 16x16 image, 3x3 kernel, scalar bias.
    H, W = 16, 16
    kernel_size = (3, 3)

    x = jax.random.normal(k_x, (H, W), dtype=jnp.float32)
    weight = jax.random.normal(k_w, kernel_size, dtype=jnp.float32)
    bias = jax.random.normal(k_b, (1,), dtype=jnp.float32)

    out = conv2d_forward(x, weight, bias)
    out = jax.block_until_ready(out)

    ref = _reference_corr2d(x, weight, bias)
    assert out.shape == (H - kernel_size[0] + 1, W - kernel_size[1] + 1)
    assert jnp.allclose(out, ref, atol=1e-4, rtol=1e-5), "mismatch vs reference (16x16)"

    # Extra sanity check that exercises the multi-tile grid + halo path.
    H2, W2 = 272, 200
    x2 = jax.random.normal(k_x2, (H2, W2), dtype=jnp.float32)
    out2 = jax.block_until_ready(conv2d_forward(x2, weight, bias))
    ref2 = _reference_corr2d(x2, weight, bias)
    assert out2.shape == (H2 - 3 + 1, W2 - 3 + 1)
    assert jnp.allclose(out2, ref2, atol=1e-4, rtol=1e-5), "mismatch vs reference (tiled)"

    print("KERNEL_OK")
</pallas_src>

<mosaic_0001>
module attributes {stable_mosaic.version = 11 : i64} {
  func.func @_corr2d_kernel(%arg0: i32, %arg1: i32, %arg2: memref<24x256xf32, #tpu.memory_space<any>>, %arg3: memref<3x3xf32, #tpu.memory_space<smem>>, %arg4: memref<1xf32, #tpu.memory_space<smem>>, %arg5: memref<16x128xf32, #tpu.memory_space<vmem>>, %arg6: memref<24x256xf32, #tpu.memory_space<vmem>>, %arg7: memref<!tpu.dma_semaphore, #tpu.memory_space<semaphore_mem>>) attributes {dimension_semantics = [#tpu.dimension_semantics<parallel>, #tpu.dimension_semantics<parallel>], iteration_bounds = array<i64: 1, 1>, scalar_prefetch = 0 : i64, scratch_operands = 2 : i64, tpu.core_type = #tpu.core_type<tc>, window_params = [{}, {transform_indices = @transform_1, window_bounds = array<i64: 3, 3>}, {transform_indices = @transform_2, window_bounds = array<i64: 1>}, {transform_indices = @transform_3, window_bounds = array<i64: 16, 128>}]} {
    %c16_i32 = arith.constant 16 : i32
    %0 = arith.muli %arg0, %c16_i32 : i32
    %1 = tpu.assume_multiple %0, 8 : i32
    %c128_i32 = arith.constant 128 : i32
    %2 = arith.muli %arg1, %c128_i32 : i32
    %3 = tpu.assume_multiple %2, 128 : i32
    %4 = tpu.memref_slice %arg2[%1, %3] : memref<24x256xf32, #tpu.memory_space<any>> -> memref<24x256xf32, #tpu.memory_space<any>>
    tpu.enqueue_dma source(%4 : memref<24x256xf32, #tpu.memory_space<any>>) target(%arg6 : memref<24x256xf32, #tpu.memory_space<vmem>>) target_semaphore(%arg7 : memref<!tpu.dma_semaphore, #tpu.memory_space<semaphore_mem>>)
    %5 = tpu.memref_slice %arg2[%1, %3] : memref<24x256xf32, #tpu.memory_space<any>> -> memref<24x256xf32, #tpu.memory_space<any>>
    tpu.wait_dma2 semaphore(%arg7 : memref<!tpu.dma_semaphore, #tpu.memory_space<semaphore_mem>>) src(%5 : memref<24x256xf32, #tpu.memory_space<any>>) dst(%arg6 : memref<24x256xf32, #tpu.memory_space<vmem>>)
    %c0 = arith.constant 0 : index
    %6 = memref.load %arg4[%c0] : memref<1xf32, #tpu.memory_space<smem>>
    %7 = vector.broadcast %6 : f32 to vector<16x128xf32>
    %c0_0 = arith.constant 0 : index
    %c0_1 = arith.constant 0 : index
    %8 = vector.load %arg6[%c0_0, %c0_1] : memref<24x256xf32, #tpu.memory_space<vmem>>, vector<16x256xf32>
    %9 = vector.extract_strided_slice %8 {offsets = [0, 0], sizes = [16, 128], strides = [1, 1]} : vector<16x256xf32> to vector<16x128xf32>
    %c0_2 = arith.constant 0 : index
    %c0_3 = arith.constant 0 : index
    %10 = memref.load %arg3[%c0_2, %c0_3] : memref<3x3xf32, #tpu.memory_space<smem>>
    %11 = vector.broadcast %10 : f32 to vector<16x128xf32>
    %12 = arith.mulf %11, %9 : vector<16x128xf32>
    %13 = arith.addf %7, %12 : vector<16x128xf32>
    %14 = vector.extract_strided_slice %8 {offsets = [0, 1], sizes = [16, 128], strides = [1, 1]} : vector<16x256xf32> to vector<16x128xf32>
    %c0_4 = arith.constant 0 : index
    %c1 = arith.constant 1 : index
    %15 = memref.load %arg3[%c0_4, %c1] : memref<3x3xf32, #tpu.memory_space<smem>>
    %16 = vector.broadcast %15 : f32 to vector<16x128xf32>
    %17 = arith.mulf %16, %14 : vector<16x128xf32>
    %18 = arith.addf %13, %17 : vector<16x128xf32>
    %19 = vector.extract_strided_slice %8 {offsets = [0, 2], sizes = [16, 128], strides = [1, 1]} : vector<16x256xf32> to vector<16x128xf32>
    %c0_5 = arith.constant 0 : index
    %c2 = arith.constant 2 : index
    %20 = memref.load %arg3[%c0_5, %c2] : memref<3x3xf32, #tpu.memory_space<smem>>
    %21 = vector.broadcast %20 : f32 to vector<16x128xf32>
    %22 = arith.mulf %21, %19 : vector<16x128xf32>
    %23 = arith.addf %18, %22 : vector<16x128xf32>
    %c1_6 = arith.constant 1 : index
    %c0_7 = arith.constant 0 : index
    %24 = vector.load %arg6[%c1_6, %c0_7] : memref<24x256xf32, #tpu.memory_space<vmem>>, vector<16x256xf32>
    %25 = vector.extract_strided_slice %24 {offsets = [0, 0], sizes = [16, 128], strides = [1, 1]} : vector<16x256xf32> to vector<16x128xf32>
    %c1_8 = arith.constant 1 : index
    %c0_9 = arith.constant 0 : index
    %26 = memref.load %arg3[%c1_8, %c0_9] : memref<3x3xf32, #tpu.memory_space<smem>>
    %27 = vector.broadcast %26 : f32 to vector<16x128xf32>
    %28 = arith.mulf %27, %25 : vector<16x128xf32>
    %29 = arith.addf %23, %28 : vector<16x128xf32>
    %30 = vector.extract_strided_slice %24 {offsets = [0, 1], sizes = [16, 128], strides = [1, 1]} : vector<16x256xf32> to vector<16x128xf32>
    %c1_10 = arith.constant 1 : index
    %c1_11 = arith.constant 1 : index
    %31 = memref.load %arg3[%c1_10, %c1_11] : memref<3x3xf32, #tpu.memory_space<smem>>
    %32 = vector.broadcast %31 : f32 to vector<16x128xf32>
    %33 = arith.mulf %32, %30 : vector<16x128xf32>
    %34 = arith.addf %29, %33 : vector<16x128xf32>
    %35 = vector.extract_strided_slice %24 {offsets = [0, 2], sizes = [16, 128], strides = [1, 1]} : vector<16x256xf32> to vector<16x128xf32>
    %c1_12 = arith.constant 1 : index
    %c2_13 = arith.constant 2 : index
    %36 = memref.load %arg3[%c1_12, %c2_13] : memref<3x3xf32, #tpu.memory_space<smem>>
    %37 = vector.broadcast %36 : f32 to vector<16x128xf32>
    %38 = arith.mulf %37, %35 : vector<16x128xf32>
    %39 = arith.addf %34, %38 : vector<16x128xf32>
    %c2_14 = arith.constant 2 : index
    %c0_15 = arith.constant 0 : index
    %40 = vector.load %arg6[%c2_14, %c0_15] : memref<24x256xf32, #tpu.memory_space<vmem>>, vector<16x256xf32>
    %41 = vector.extract_strided_slice %40 {offsets = [0, 0], sizes = [16, 128], strides = [1, 1]} : vector<16x256xf32> to vector<16x128xf32>
    %c2_16 = arith.constant 2 : index
    %c0_17 = arith.constant 0 : index
    %42 = memref.load %arg3[%c2_16, %c0_17] : memref<3x3xf32, #tpu.memory_space<smem>>
    %43 = vector.broadcast %42 : f32 to vector<16x128xf32>
    %44 = arith.mulf %43, %41 : vector<16x128xf32>
    %45 = arith.addf %39, %44 : vector<16x128xf32>
    %46 = vector.extract_strided_slice %40 {offsets = [0, 1], sizes = [16, 128], strides = [1, 1]} : vector<16x256xf32> to vector<16x128xf32>
    %c2_18 = arith.constant 2 : index
    %c1_19 = arith.constant 1 : index
    %47 = memref.load %arg3[%c2_18, %c1_19] : memref<3x3xf32, #tpu.memory_space<smem>>
    %48 = vector.broadcast %47 : f32 to vector<16x128xf32>
    %49 = arith.mulf %48, %46 : vector<16x128xf32>
    %50 = arith.addf %45, %49 : vector<16x128xf32>
    %51 = vector.extract_strided_slice %40 {offsets = [0, 2], sizes = [16, 128], strides = [1, 1]} : vector<16x256xf32> to vector<16x128xf32>
    %c2_20 = arith.constant 2 : index
    %c2_21 = arith.constant 2 : index
    %52 = memref.load %arg3[%c2_20, %c2_21] : memref<3x3xf32, #tpu.memory_space<smem>>
    %53 = vector.broadcast %52 : f32 to vector<16x128xf32>
    %54 = arith.mulf %53, %51 : vector<16x128xf32>
    %55 = arith.addf %50, %54 : vector<16x128xf32>
    %c0_22 = arith.constant 0 : index
    %c0_23 = arith.constant 0 : index
    %56 = vector.load %arg5[%c0_22, %c0_23] : memref<16x128xf32, #tpu.memory_space<vmem>>, vector<16x128xf32>
    tpu.vector_store %arg5[%c0_22, %c0_23], %55 {strides = array<i32>} : memref<16x128xf32, #tpu.memory_space<vmem>>, vector<16x128xf32>,
    return
  }
  func.func @transform_1(%arg0: i32, %arg1: i32) -> (i32, i32) {
    %c0_i32 = arith.constant 0 : i32
    %c0_i32_0 = arith.constant 0 : i32
    %c0_i32_1 = arith.constant 0 : i32
    return %c0_i32, %c0_i32_0 : i32, i32
  }
  func.func @transform_2(%arg0: i32, %arg1: i32) -> i32 {
    %c0_i32 = arith.constant 0 : i32
    %c0_i32_0 = arith.constant 0 : i32
    return %c0_i32 : i32
  }
  func.func @transform_3(%arg0: i32, %arg1: i32) -> (i32, i32) {
    %c0_i32 = arith.constant 0 : i32
    return %arg0, %arg1 : i32, i32
  }
}

</mosaic_0001>

<llo_original>
// kernel: tpu_custom_call.1
$region0: #{tpu_custom_call.1}
  #allocation0 [shape = 'u32[]', space=smem, size = 0x4, offset = 0x4, fixed_abs, tag = 'smem constant byte address 0x4 - core index']
  #allocation1 [shape = 'u32[72,128]{1,0:T(1,128)}', space=vmem, size = 0x9000, scoped, tag = 'internal scratch']
  #allocation2 [shape = 'f32[24,256]{1,0:T(8,128)}', space=vmem, size = 0x6000, scoped, tag = 'scratch operand']
  #allocation3 [shape = 's32[1]{0}', space=sflag, size = 0x4, scoped, tag = 'scratch operand']
  #allocation4 [shape = 'f32[1]{0:T(128)S(6)}', space=smem, size = 0x200, scoped, tag = 'scoped memory for tpu_custom_call.1']
  #allocation9 [shape = 's32[]', space=sflag, size = 0x4, offset = 0, fixed_abs, tag = 'sflag constant byte address 0x0 - dummy sync flag']
  #allocation10 [shape = 's32[]', space=sflag, size = 0x4, offset = 0, fixed_abs, tag = 'sflag constant byte address 0x0 - dummy sync flag']
  #allocation11 [shape = 'u32[]', space=smem, size = 0x4, offset = 0x44, fixed_abs, tag = 'smem constant byte address 0x44 - assertion arg 0']
  #allocation12 [shape = 'u32[]', space=smem, size = 0x4, offset = 0x48, fixed_abs, tag = 'smem constant byte address 0x48 - assertion arg 1']
  %s0 = inlined_call_operand.hbm [shape: f32[24,256], index: 0, kind: input, shape index: {}]
  %s1 = inlined_call_operand.hbm [shape: f32[3,3], index: 1, kind: input, shape index: {}]
  %s2 = inlined_call_operand.<no memory space> [shape: f32[1], index: 2, kind: input, shape index: {}]
  %s3 = inlined_call_operand.hbm [shape: f32[16,128], index: 3, kind: output, shape index: {}]
  %s4 = sld [smem:[#allocation0]]
  $region26: #{tpu_custom_call.1} parent=0
    _
  %s6 = ssub.s32 1, %s4
  %s7 = scalar_select 0, %s6, %s4
  %8 = sst [smem:[#allocation4]] %s2
  $region1: #{tpu_custom_call.1} parent=0
    #allocation5 [shape = 'u8[2048]{0}', space=smem, size = 0x800, scoped, tag = 'input window, operand 1, single buffered']
    #allocation6 [shape = 's32[1]{0}', space=sflag, size = 0x4, scoped, tag = 'scoped memory for tpu_custom_call.1']
    #allocation7 [shape = 's32[1]{0}', space=sflag, size = 0x4, scoped, tag = 'scoped memory for tpu_custom_call.1']
    #allocation8 [shape = 'u8[8192]{0}', space=vmem, size = 0x2000, scoped, tag = 'output window, operand 0, single buffered']
    %9 = vsyncpa [#allocation7], 0
    %10 = vsyncpa [#allocation6], 0
    // Predicated region
    $region2: #{tpu_custom_call.1} parent=1 // pred_check
      _
    $region3: #{tpu_custom_call.1} parent=1 // pred_check_branch
      %12 = sbr.rel (0) target = $region5
    $region4: #{tpu_custom_call.1} parent=1 // pred_region
      %14 = vsyncadd [#allocation7], 0
      %s16 = sshll.u32 %s1, 4
      %s17 = int_to_ptr.hbm [resolvable:$true] %s16
      %19 = dma.hbm_to_smem %s17, 64, [#allocation5], [#allocation7]
    $region5: #{tpu_custom_call.1} parent=1 // pred_fallthru
      _
    // Predicated region
    $region6: #{tpu_custom_call.1} parent=1 // pred_check
      _
    $region7: #{tpu_custom_call.1} parent=1 // pred_check_branch
      %21 = sbr.rel (0) target = $region9
    $region8: #{tpu_custom_call.1} parent=1 // pred_region
      _
    $region9: #{tpu_custom_call.1} parent=1 // pred_fallthru
      _
    // Predicated region
    $region10: #{tpu_custom_call.1} parent=1 // pred_check
      _
    $region11: #{tpu_custom_call.1} parent=1 // pred_check_branch
      %23 = sbr.rel (0) target = $region13
    $region12: #{tpu_custom_call.1} parent=1 // pred_region
      %25 = dma.done [#allocation7], 64
    $region13: #{tpu_custom_call.1} parent=1 // pred_fallthru
      _
    %26 = sfence
    %s27 = smul.u32 0, 16
    %s28 = smul.u32 0, 128
    %s29 = sshra.s32 %s28, 7
    %s30 = sand.u32 %s28, 127
    %s31 = sshra.s32 %s27, 3
    %s32 = sand.u32 %s27, 7
    %s33 = smul.u32 %s31, 2
    %s34 = sadd.s32 %s29, %s33
    %s35 = smul.addr %s34, 8
    %s36 = scalar_lea.hbm %s0, %s35
    // Predicated region
    $region14: #{tpu_custom_call.1} parent=1 // pred_check
      _
    $region15: #{tpu_custom_call.1} parent=1 // pred_check_branch
      %38 = sbr.rel target = $region17
    $region16: #{tpu_custom_call.1} parent=1 // pred_region
      %39 = sst [smem:[#allocation11]] [#allocation10]
      %40 = sst [smem:[#allocation12]] [#allocation9]
    $region17: #{tpu_custom_call.1} parent=1 // pred_fallthru
      _
    %42 = shalt.err (0)
    %s44 = sshll.u32 %s36, 4
    %s45 = int_to_ptr.hbm [resolvable:$true] %s44
    %s46 = sshll.u32 [#allocation2], 4
    %s47 = int_to_ptr.vmem [resolvable:$true] %s46
    %49 = dma.hbm_to_vmem [thread:$0]  %s45, 768, %s47, [#allocation3]
    %s50 = smul.u32 8, 3
    %s51 = smul.u32 %s50, 2
    %s52 = sshll.u32 %s51, 4
    %53 = dma.done [#allocation3], %s52
    %s54 = sld [smem:[#allocation4]]
    %v55 = vstv %s54
    %v56 = vld [vmem:[#allocation2] sm:$0xff]
    %v57 = vld [vmem:[#allocation2 + $0x8] sm:$0xff]
    %v58 = vld [vmem:[#allocation2 + $0x10] sm:$0xff]
    %v59 = vld [vmem:[#allocation2 + $0x18] sm:$0xff]
    %s60 = sld [smem:[#allocation5]]
    %v61 = vstv %s60
    %v62 = vmul.f32 %v61, %v56
    %v63 = vmul.f32 %v61, %v58
    %v64 = vadd.f32 %v55, %v62
    %v65 = vadd.f32 %v55, %v63
    %s66 = sld [smem:[#allocation5 + $0x1]]
    %v67 = vstv %s66
    %v68 = vmul.f32 %v67, %v56
    %v69 = vmul.f32 %v67, %v57
    %v70 = vmul.f32 %v67, %v58
    %v71 = vmul.f32 %v67, %v59
    %76 = vrot.lane.b32.xlu0 %v68, 127
    %v77 = vpop.permute.xlu0 %76
    %78 = vrot.lane.b32.xlu0 %v69, 127
    %v79 = vpop.permute.xlu0 %78
    %80 = vrot.lane.b32.xlu0 %v70, 127
    %v81 = vpop.permute.xlu0 %80
    %82 = vrot.lane.b32.xlu0 %v71, 127
    %v83 = vpop.permute.xlu0 %82
    %vm84 = vcmask 1039360
    %v85 = vsel %vm84, %v77, %v79
    %v86 = vsel %vm84, %v81, %v83
    %v89 = vadd.f32 %v64, %v85
    %v90 = vadd.f32 %v65, %v86
    %s91 = sld [smem:[#allocation5 + $0x2]]
    %v92 = vstv %s91
    %v93 = vmul.f32 %v92, %v56
    %v94 = vmul.f32 %v92, %v57
    %v95 = vmul.f32 %v92, %v58
    %v96 = vmul.f32 %v92, %v59
    %101 = vrot.lane.b32.xlu0 %v93, 126
    %v102 = vpop.permute.xlu0 %101
    %103 = vrot.lane.b32.xlu0 %v94, 126
    %v104 = vpop.permute.xlu0 %103
    %105 = vrot.lane.b32.xlu0 %v95, 126
    %v106 = vpop.permute.xlu0 %105
    %107 = vrot.lane.b32.xlu0 %v96, 126
    %v108 = vpop.permute.xlu0 %107
    %vm109 = vcmask 1031168
    %v110 = vsel %vm109, %v102, %v104
    %v111 = vsel %vm109, %v106, %v108
    %v114 = vadd.f32 %v89, %v110
    %v115 = vadd.f32 %v90, %v111
    %v116 = vld [vmem:[#allocation2] sm:$0xfe]
    %v117 = vld [vmem:[#allocation2 + $0x8] sm:$0xfe]
    %v118 = vld [vmem:[#allocation2 + $0x10] sm:$0xff]
    %v119 = vld [vmem:[#allocation2 + $0x18] sm:$0xff]
    %v120 = vld [vmem:[#allocation2 + $0x20] sm:$0x1]
    %v121 = vld [vmem:[#allocation2 + $0x28] sm:$0x1]
    %s122 = sld [smem:[#allocation5 + $0x80]]
    %v123 = vstv %s122
    %v124 = vmul.f32 %v123, %v116
    %v125 = vmul.f32 %v123, %v118
    %v126 = vmul.f32 %v123, %v120
    %vm130 = vcmask 1046528
    %v131 = vrot.slane %v124, 1
    %v132 = vrot.slane %v125, 1
    %v133 = vsel %vm130, %v131, %v132
    %v134 = vrot.slane %v126, 1
    %v135 = vsel %vm130, %v132, %v134
    %v138 = vadd.f32 %v114, %v133
    %v139 = vadd.f32 %v115, %v135
    %s140 = sld [smem:[#allocation5 + $0x81]]
    %v141 = vstv %s140
    %v142 = vmul.f32 %v141, %v116
    %v143 = vmul.f32 %v141, %v117
    %v144 = vmul.f32 %v141, %v118
    %v145 = vmul.f32 %v141, %v119
    %v146 = vmul.f32 %v141, %v120
    %v147 = vmul.f32 %v141, %v121
    %v154 = vrot.slane %v142, 1
    %v155 = vrot.slane %v144, 1
    %v156 = vsel %vm130, %v154, %v155
    %v157 = vrot.slane %v143, 1
    %v158 = vrot.slane %v145, 1
    %v159 = vsel %vm130, %v157, %v158
    %v160 = vrot.slane %v146, 1
    %v161 = vsel %vm130, %v155, %v160
    %v162 = vrot.slane %v147, 1
    %v163 = vsel %vm130, %v158, %v162
    %164 = vrot.lane.b32.xlu0 %v156, 127
    %v165 = vpop.permute.xlu0 %164
    %166 = vrot.lane.b32.xlu0 %v159, 127
    %v167 = vpop.permute.xlu0 %166
    %168 = vrot.lane.b32.xlu0 %v161, 127
    %v169 = vpop.permute.xlu0 %168
    %170 = vrot.lane.b32.xlu0 %v163, 127
    %v171 = vpop.permute.xlu0 %170
    %v172 = vsel %vm84, %v165, %v167
    %v173 = vsel %vm84, %v169, %v171
    %v176 = vadd.f32 %v138, %v172
    %v177 = vadd.f32 %v139, %v173
    %s178 = sld [smem:[#allocation5 + $0x82]]
    %v179 = vstv %s178
    %v180 = vmul.f32 %v179, %v116
    %v181 = vmul.f32 %v179, %v117
    %v182 = vmul.f32 %v179, %v118
    %v183 = vmul.f32 %v179, %v119
    %v184 = vmul.f32 %v179, %v120
    %v185 = vmul.f32 %v179, %v121
    %v192 = vrot.slane %v180, 1
    %v193 = vrot.slane %v182, 1
    %v194 = vsel %vm130, %v192, %v193
    %v195 = vrot.slane %v181, 1
    %v196 = vrot.slane %v183, 1
    %v197 = vsel %vm130, %v195, %v196
    %v198 = vrot.slane %v184, 1
    %v199 = vsel %vm130, %v193, %v198
    %v200 = vrot.slane %v185, 1
    %v201 = vsel %vm130, %v196, %v200
    %202 = vrot.lane.b32.xlu0 %v194, 126
    %v203 = vpop.permute.xlu0 %202
    %204 = vrot.lane.b32.xlu0 %v197, 126
    %v205 = vpop.permute.xlu0 %204
    %206 = vrot.lane.b32.xlu0 %v199, 126
    %v207 = vpop.permute.xlu0 %206
    %208 = vrot.lane.b32.xlu0 %v201, 126
    %v209 = vpop.permute.xlu0 %208
    %v210 = vsel %vm109, %v203, %v205
    %v211 = vsel %vm109, %v207, %v209
    %v214 = vadd.f32 %v176, %v210
    %v215 = vadd.f32 %v177, %v211
    %v216 = vld [vmem:[#allocation2] sm:$0xfc]
    %v217 = vld [vmem:[#allocation2 + $0x8] sm:$0xfc]
    %v218 = vld [vmem:[#allocation2 + $0x20] sm:$0x3]
    %v219 = vld [vmem:[#allocation2 + $0x28] sm:$0x3]
    %s220 = sld [smem:[#allocation5 + $0x100]]
    %v221 = vstv %s220
    %v222 = vmul.f32 %v221, %v216
    %v223 = vmul.f32 %v221, %v118
    %v224 = vmul.f32 %v221, %v218
    %vm228 = vcmask 1045504
    %v229 = vrot.slane %v222, 2
    %v230 = vrot.slane %v223, 2
    %v231 = vsel %vm228, %v229, %v230
    %v232 = vrot.slane %v224, 2
    %v233 = vsel %vm228, %v230, %v232
    %v236 = vadd.f32 %v214, %v231
    %v237 = vadd.f32 %v215, %v233
    %s238 = sld [smem:[#allocation5 + $0x101]]
    %v239 = vstv %s238
    %v240 = vmul.f32 %v239, %v216
    %v241 = vmul.f32 %v239, %v217
    %v242 = vmul.f32 %v239, %v118
    %v243 = vmul.f32 %v239, %v119
    %v244 = vmul.f32 %v239, %v218
    %v245 = vmul.f32 %v239, %v219
    %v252 = vrot.slane %v240, 2
    %v253 = vrot.slane %v242, 2
    %v254 = vsel %vm228, %v252, %v253
    %v255 = vrot.slane %v241, 2
    %v256 = vrot.slane %v243, 2
    %v257 = vsel %vm228, %v255, %v256
    %v258 = vrot.slane %v244, 2
    %v259 = vsel %vm228, %v253, %v258
    %v260 = vrot.slane %v245, 2
    %v261 = vsel %vm228, %v256, %v260
    %262 = vrot.lane.b32.xlu0 %v254, 127
    %v263 = vpop.permute.xlu0 %262
    %264 = vrot.lane.b32.xlu0 %v257, 127
    %v265 = vpop.permute.xlu0 %264
    %266 = vrot.lane.b32.xlu0 %v259, 127
    %v267 = vpop.permute.xlu0 %266
    %268 = vrot.lane.b32.xlu0 %v261, 127
    %v269 = vpop.permute.xlu0 %268
    %v270 = vsel %vm84, %v263, %v265
    %v271 = vsel %vm84, %v267, %v269
    %v274 = vadd.f32 %v236, %v270
    %v275 = vadd.f32 %v237, %v271
    %s276 = sld [smem:[#allocation5 + $0x102]]
    %v277 = vstv %s276
    %v278 = vmul.f32 %v277, %v216
    %v279 = vmul.f32 %v277, %v217
    %v280 = vmul.f32 %v277, %v118
    %v281 = vmul.f32 %v277, %v119
    %v282 = vmul.f32 %v277, %v218
    %v283 = vmul.f32 %v277, %v219
    %v290 = vrot.slane %v278, 2
    %v291 = vrot.slane %v280, 2
    %v292 = vsel %vm228, %v290, %v291
    %v293 = vrot.slane %v279, 2
    %v294 = vrot.slane %v281, 2
    %v295 = vsel %vm228, %v293, %v294
    %v296 = vrot.slane %v282, 2
    %v297 = vsel %vm228, %v291, %v296
    %v298 = vrot.slane %v283, 2
    %v299 = vsel %vm228, %v294, %v298
    %300 = vrot.lane.b32.xlu0 %v292, 126
    %v301 = vpop.permute.xlu0 %300
    %302 = vrot.lane.b32.xlu0 %v295, 126
    %v303 = vpop.permute.xlu0 %302
    %304 = vrot.lane.b32.xlu0 %v297, 126
    %v305 = vpop.permute.xlu0 %304
    %306 = vrot.lane.b32.xlu0 %v299, 126
    %v307 = vpop.permute.xlu0 %306
    %v308 = vsel %vm109, %v301, %v303
    %v309 = vsel %vm109, %v305, %v307
    %v312 = vadd.f32 %v274, %v308
    %v313 = vadd.f32 %v275, %v309
    %314 = vst [vmem:[#allocation8] sm:$0xff] %v312
    %315 = vst [vmem:[#allocation8 + $0x8] sm:$0xff] %v313
    // Predicated region
    $region18: #{tpu_custom_call.1} parent=1 // pred_check
      _
    $region19: #{tpu_custom_call.1} parent=1 // pred_check_branch
      %317 = sbr.rel (0) target = $region21
    $region20: #{tpu_custom_call.1} parent=1 // pred_region
      %319 = vsyncadd [#allocation6], 0
      %s320 = sshll.u32 [#allocation8], 4
      %s321 = int_to_ptr.vmem [resolvable:$true] %s320
      %s322 = sshll.u32 %s3, 4
      %s323 = int_to_ptr.hbm [resolvable:$true] %s322
      %328 = dma.vmem_to_hbm [thread:$0]  %s321, 256, %s323, [#allocation6], 128, 128, 8
    $region21: #{tpu_custom_call.1} parent=1 // pred_fallthru
      _
    // Predicated region
    $region22: #{tpu_custom_call.1} parent=1 // pred_check
      _
    $region23: #{tpu_custom_call.1} parent=1 // pred_check_branch
      %330 = sbr.rel (0) target = $region25
    $region24: #{tpu_custom_call.1} parent=1 // pred_region
      %332 = dma.done [#allocation6], 256
    $region25: #{tpu_custom_call.1} parent=1 // pred_fallthru
      _
    %333 = vsyncpa [#allocation6], 1
    %334 = vsyncpa [#allocation7], 1
  %335 = vsyncmov [#allocation3]
  %s336 = vpop.sfrf %335
  %p337 = scmp.eq.s32.totalorder %s336, 0
  %p338 = pneg %p337
  %340 = shalt.err (%p338)

</llo_original>
